<compile_context>
chip_gen: v6e
topology: v6e:2x2x1
jax: 0.10.0
libtpu: 0.0.40
codegen_flags: <defaults>
</compile_context>

<pallas_src>
import functools
import math

import jax
import jax.numpy as jnp
from jax.experimental import pallas as pl
from jax.experimental.pallas import tpu as pltpu


def _fix_activity_norm_kernel(x_ref, o_ref, *, rmax):
    x = x_ref[...]
    # Row-wise sum over the feature (last / lane) axis, accumulated in f32
    # (keeps the big tile in its native dtype; only the [tm,1] column is f32).
    s = jnp.sum(x, axis=-1, keepdims=True, dtype=jnp.float32) + 1e-6
    # Exact per-row reciprocal with rmax folded in -> one broadcast multiply
    # over the full tile instead of a full-tile divide + scalar multiply.
    scale = rmax * pl.reciprocal(s, approx=False)
    o_ref[...] = (x * scale).astype(o_ref.dtype)


def _pick_row_tile(rows, num_features, itemsize, block_bytes_target):
    """Largest row tile that keeps one block under the byte target."""
    # Packed-sublane multiple: 8 for f32, 16 for bf16, 32 for int8/fp8.
    sub = max(8, 32 // itemsize)
    bytes_per_row = num_features * itemsize
    tm = max(sub, (block_bytes_target // max(bytes_per_row, 1)) // sub * sub)
    if rows <= tm:
        # Whole slab fits in one block; a full-extent block dim is always legal.
        return rows
    return tm


def fix_activity_norm(x, *, block_bytes_target=4 * 1024 * 1024):
    """Applies FixActivityNorm along the last axis of x."""
    num_features = x.shape[-1]
    rmax = num_features / 2.0

    orig_shape = x.shape
    rows = math.prod(orig_shape[:-1]) if len(orig_shape) > 1 else 1
    x2d = x.reshape(rows, num_features)

    itemsize = jnp.dtype(x.dtype).itemsize
    tm = _pick_row_tile(rows, num_features, itemsize, block_bytes_target)

    # Pad rows to a tile multiple so tm can be chosen for performance, not
    # divisibility. Zero-padded rows produce 0 / 1e-6 = 0 (no NaNs).
    num_blocks = pl.cdiv(rows, tm)
    rows_padded = num_blocks * tm
    if rows_padded != rows:
        x2d = jnp.pad(x2d, ((0, rows_padded - rows), (0, 0)))

    # NOTE: for num_features < 128 the stores are masked (lane-sparse); a
    # lane-packed layout with a segmented reduce would be denser, but the
    # kernel stays correct for any feature width.
    kernel = functools.partial(_fix_activity_norm_kernel, rmax=rmax)

    out2d = pl.pallas_call(
        kernel,
        out_shape=jax.ShapeDtypeStruct((rows_padded, num_features), x.dtype),
        grid_spec=pltpu.PrefetchScalarGridSpec(
            num_scalar_prefetch=0,
            grid=(num_blocks,),
            in_specs=[pl.BlockSpec((tm, num_features), lambda i: (i, 0))],
            out_specs=pl.BlockSpec((tm, num_features), lambda i: (i, 0)),
        ),
        compiler_params=pltpu.CompilerParams(
            dimension_semantics=("parallel",),
            vmem_limit_bytes=32 * 1024 * 1024,
        ),
        cost_estimate=pl.CostEstimate(
            flops=2 * rows_padded * num_features,
            transcendentals=rows_padded,
            bytes_accessed=2 * rows_padded * num_features * itemsize,
        ),
    )(x2d)

    if rows_padded != rows:
        out2d = out2d[:rows]
    return out2d.reshape(orig_shape)


if __name__ == "__main__":
    key = jax.random.PRNGKey(0)
    # small shapes consistent with the module: batch=2, seq=8, hidden=32
    x = jax.random.normal(key, (2, 8, 32), dtype=jnp.float32)

    out = fix_activity_norm(x)
    out = jax.block_until_ready(out)

    # reference check in plain JAX (same semantics as the PyTorch module)
    rmax = x.shape[-1] / 2.0
    ref = rmax * x / (jnp.sum(x, axis=-1, keepdims=True) + 1e-6)
    assert out.shape == x.shape
    assert jnp.allclose(out, ref, atol=1e-5, rtol=1e-5), "mismatch vs reference"

    # also exercise a ragged, larger-row case to cover the padding path
    x2 = jax.random.normal(jax.random.PRNGKey(1), (3, 37, 256), dtype=jnp.float32)
    out2 = jax.block_until_ready(fix_activity_norm(x2))
    ref2 = (x2.shape[-1] / 2.0) * x2 / (jnp.sum(x2, axis=-1, keepdims=True) + 1e-6)
    assert jnp.allclose(out2, ref2, atol=1e-5, rtol=1e-5), "mismatch vs reference (ragged)"

    print("KERNEL_OK")
</pallas_src>

<mosaic_0001>
module attributes {stable_mosaic.version = 11 : i64} {
  func.func @_fix_activity_norm_kernel(%arg0: i32, %arg1: memref<16x32xf32, #tpu.memory_space<vmem>>, %arg2: memref<16x32xf32, #tpu.memory_space<vmem>>) attributes {dimension_semantics = [#tpu.dimension_semantics<parallel>], iteration_bounds = array<i64: 1>, scalar_prefetch = 0 : i64, scratch_operands = 0 : i64, tpu.core_type = #tpu.core_type<tc>, window_params = [{transform_indices = @transform_0, window_bounds = array<i64: 16, 32>}, {transform_indices = @transform_1, window_bounds = array<i64: 16, 32>}]} {
    %c0 = arith.constant 0 : index
    %c0_0 = arith.constant 0 : index
    %0 = vector.load %arg1[%c0, %c0_0] : memref<16x32xf32, #tpu.memory_space<vmem>>, vector<16x32xf32>
    %cst = arith.constant dense<0.000000e+00> : vector<16xf32>
    %1 = vector.multi_reduction <add>, %0, %cst [1] : vector<16x32xf32> to vector<16xf32>
    %2 = vector.shape_cast %1 : vector<16xf32> to vector<16x1xf32>
    %cst_1 = arith.constant 9.99999997E-7 : f32
    %3 = vector.broadcast %cst_1 : f32 to vector<16x1xf32>
    %4 = arith.addf %2, %3 : vector<16x1xf32>
    %5 = tpu.reciprocal %4 : vector<16x1xf32> -> vector<16x1xf32>
    %cst_2 = arith.constant 1.600000e+01 : f32
    %6 = vector.broadcast %cst_2 : f32 to vector<16x1xf32>
    %7 = arith.mulf %6, %5 : vector<16x1xf32>
    %8 = vector.broadcast %7 : vector<16x1xf32> to vector<16x32xf32>
    %9 = arith.mulf %0, %8 : vector<16x32xf32>
    %c0_3 = arith.constant 0 : index
    %c0_4 = arith.constant 0 : index
    %10 = vector.load %arg2[%c0_3, %c0_4] : memref<16x32xf32, #tpu.memory_space<vmem>>, vector<16x32xf32>
    tpu.vector_store %arg2[%c0_3, %c0_4], %9 {strides = array<i32>} : memref<16x32xf32, #tpu.memory_space<vmem>>, vector<16x32xf32>,
    return
  }
  func.func @transform_0(%arg0: i32) -> (i32, i32) {
    %c0_i32 = arith.constant 0 : i32
    %c0_i32_0 = arith.constant 0 : i32
    return %arg0, %c0_i32 : i32, i32
  }
  func.func @transform_1(%arg0: i32) -> (i32, i32) {
    %c0_i32 = arith.constant 0 : i32
    %c0_i32_0 = arith.constant 0 : i32
    return %arg0, %c0_i32 : i32, i32
  }
}

</mosaic_0001>

<llo_original>
// kernel: tpu_custom_call.1
$region0: #{tpu_custom_call.1}
  #allocation0 [shape = 'u32[]', space=smem, size = 0x4, offset = 0x4, fixed_abs, tag = 'smem constant byte address 0x4 - core index']
  #allocation1 [shape = 'u32[144,128]{1,0:T(1,128)}', space=vmem, size = 0x12000, scoped, tag = 'internal scratch']
  %s0 = inlined_call_operand.hbm [shape: f32[16,32], index: 0, kind: input, shape index: {}]
  %s1 = inlined_call_operand.hbm [shape: f32[16,32], index: 1, kind: output, shape index: {}]
  %s2 = sld [smem:[#allocation0]]
  $region18: #{tpu_custom_call.1} parent=0
    _
  %s4 = ssub.s32 1, %s2
  %s5 = scalar_select 0, %s4, %s2
  $region1: #{tpu_custom_call.1} parent=0
    #allocation2 [shape = 'u8[8192]{0}', space=vmem, size = 0x2000, scoped, tag = 'input window, operand 0, single buffered']
    #allocation3 [shape = 's32[1]{0}', space=sflag, size = 0x4, scoped, tag = 'scoped memory for tpu_custom_call.1']
    #allocation4 [shape = 's32[1]{0}', space=sflag, size = 0x4, scoped, tag = 'scoped memory for tpu_custom_call.1']
    #allocation5 [shape = 'u8[8192]{0}', space=vmem, size = 0x2000, scoped, tag = 'output window, operand 0, single buffered']
    %6 = vsyncpa [#allocation3], 0
    %7 = vsyncpa [#allocation4], 0
    // Predicated region
    $region2: #{tpu_custom_call.1} parent=1 // pred_check
      _
    $region3: #{tpu_custom_call.1} parent=1 // pred_check_branch
      %9 = sbr.rel (0) target = $region5
    $region4: #{tpu_custom_call.1} parent=1 // pred_region
      %s11 = ssub.s32 256, 256
      %12 = vsyncadd [#allocation3], %s11
      %s13 = sshll.u32 [#allocation2], 4
      %s14 = int_to_ptr.vmem [resolvable:$true] %s13
      %19 = dma.hbm_to_vmem [thread:$0]  %s0, 256, %s14, [#allocation3], 128, 128, 8
    $region5: #{tpu_custom_call.1} parent=1 // pred_fallthru
      _
    // Predicated region
    $region6: #{tpu_custom_call.1} parent=1 // pred_check
      _
    $region7: #{tpu_custom_call.1} parent=1 // pred_check_branch
      %21 = sbr.rel (0) target = $region9
    $region8: #{tpu_custom_call.1} parent=1 // pred_region
      %22 = dma.done [#allocation3], 256
    $region9: #{tpu_custom_call.1} parent=1 // pred_fallthru
      _
    %v23 = vld [vmem:[#allocation2] sm:$0xff]
    %v24 = vld [vmem:[#allocation2 + $0x8] sm:$0xff]
    %vm25 = vcmask 261120
    %v26 = vsel %vm25, %v23, 0.0
    %27 = vadd.xlane.f32.xlu0 %v26
    %v28 = vpop.xlane.xlu0 %27
    %v29 = vsel %vm25, %v24, 0.0
    %30 = vadd.xlane.f32.xlu0 %v29
    %v31 = vpop.xlane.xlu0 %30
    %v32 = vadd.f32 %v28, 1e-06
    %v33 = vadd.f32 %v31, 1e-06
    %v34 = vrcp.pop %v32
    %v35 = vrcp.pop %v33
    %v36 = vmul.f32 %v34, 16.0
    %v37 = vmul.f32 %v35, 16.0
    %v38 = vmul.f32 %v23, %v36
    %v39 = vmul.f32 %v24, %v37
    %40 = vst.msk [vmem:[#allocation5] sm:$0xff] %vm25, %v38
    %41 = vst.msk [vmem:[#allocation5 + $0x8] sm:$0xff] %vm25, %v39
    // Predicated region
    $region10: #{tpu_custom_call.1} parent=1 // pred_check
      _
    $region11: #{tpu_custom_call.1} parent=1 // pred_check_branch
      %43 = sbr.rel (0) target = $region13
    $region12: #{tpu_custom_call.1} parent=1 // pred_region
      %s45 = ssub.s32 256, 256
      %46 = vsyncadd [#allocation4], %s45
      %s47 = sshll.u32 [#allocation5], 4
      %s48 = int_to_ptr.vmem [resolvable:$true] %s47
      %53 = dma.vmem_to_hbm [thread:$0]  %s48, 256, %s1, [#allocation4], 128, 128, 8
    $region13: #{tpu_custom_call.1} parent=1 // pred_fallthru
      _
    // Predicated region
    $region14: #{tpu_custom_call.1} parent=1 // pred_check
      _
    $region15: #{tpu_custom_call.1} parent=1 // pred_check_branch
      %55 = sbr.rel (0) target = $region17
    $region16: #{tpu_custom_call.1} parent=1 // pred_region
      %56 = dma.done [#allocation4], 256
    $region17: #{tpu_custom_call.1} parent=1 // pred_fallthru
      _
    %57 = vsyncpa [#allocation3], 1
    %58 = vsyncpa [#allocation4], 1

</llo_original>
